<compile_context>
chip_gen: v5e
topology: v5e:2x2
jax: 0.10.0
libtpu: 0.0.40
codegen_flags: <defaults>
</compile_context>

<pallas_src>
import functools

import jax
import jax.numpy as jnp
from jax.experimental import pallas as pl
from jax.experimental.pallas import tpu as pltpu


def _round_up(x, m):
    return ((x + m - 1) // m) * m


def _choose_tile(dim, max_tile, align):
    """Pick an aligned tile <= max_tile that minimizes padding of `dim`."""
    d_al = _round_up(dim, align)
    if d_al <= max_tile:
        return d_al
    nblocks = pl.cdiv(d_al, max_tile)
    return _round_up(pl.cdiv(dim, nblocks), align)


def _linear_kernel(*refs, has_bias, use_acc):
    """One (tm, tn) output tile of x @ w_t, accumulating over the K grid axis.

    refs layout: x_ref(tm,tk), w_ref(tk,tn), [b_ref(1,tn)], o_ref(tm,tn),
                 [acc_ref(tm,tn) f32 scratch, only when use_acc].
    """
    x_ref, w_ref = refs[0], refs[1]
    idx = 2
    b_ref = None
    if has_bias:
        b_ref = refs[idx]
        idx += 1
    o_ref = refs[idx]
    idx += 1
    acc_ref = refs[idx] if use_acc else o_ref  # accumulate in-place if f32 out

    k = pl.program_id(2)

    @pl.when(k == 0)
    def _():
        acc_ref[...] = jnp.zeros_like(acc_ref)

    acc_ref[...] += jnp.dot(
        x_ref[...], w_ref[...], preferred_element_type=jnp.float32
    )

    if has_bias or use_acc:
        # Fused epilogue: bias add + cast, cheap VPU work hidden under the MXU.
        @pl.when(k == pl.num_programs(2) - 1)
        def _():
            res = acc_ref[...]
            if has_bias:
                res = res + b_ref[...].astype(jnp.float32)
            o_ref[...] = res.astype(o_ref.dtype)


def _linear_pallas_padded(x2d, w_t, bias2d, *, tm, tn, tk):
    """x2d: (Mp, Kp), w_t: (Kp, Np), bias2d: (1, Np) or None. Dims divide tiles."""
    Mp, Kp = x2d.shape
    Kp2, Np = w_t.shape
    assert Kp == Kp2 and Mp % tm == 0 and Np % tn == 0 and Kp % tk == 0

    has_bias = bias2d is not None
    out_dtype = x2d.dtype
    use_acc = out_dtype != jnp.float32  # f32 out: accumulate directly in o_ref

    grid = (Mp // tm, Np // tn, Kp // tk)

    in_specs = [
        pl.BlockSpec((tm, tk), lambda i, j, k: (i, k)),  # x tile
        pl.BlockSpec((tk, tn), lambda i, j, k: (k, j)),  # pre-transposed weight
    ]
    args = [x2d, w_t]
    if has_bias:
        in_specs.append(pl.BlockSpec((1, tn), lambda i, j, k: (0, j)))
        args.append(bias2d)

    scratch_shapes = []
    if use_acc:
        scratch_shapes.append(pltpu.VMEM((tm, tn), jnp.float32))

    itemsize = jnp.dtype(x2d.dtype).itemsize
    out_itemsize = jnp.dtype(out_dtype).itemsize
    vmem_need = (
        2 * (tm * tk + tk * tn) * itemsize      # double-buffered input tiles
        + 2 * tm * tn * out_itemsize            # double-buffered output tile
        + (tm * tn * 4 if use_acc else 0)       # f32 accumulator scratch
        + (2 * tn * itemsize if has_bias else 0)
    )
    # Stay well under v7x's 64 MiB physical VMEM while giving the compiler room.
    vmem_limit = int(max(32 * 2**20, min(2 * vmem_need + (4 << 20), 48 * 2**20)))

    cost = pl.CostEstimate(
        flops=2 * Mp * Np * Kp,
        transcendentals=0,
        bytes_accessed=(Mp * Kp + Kp * Np) * itemsize + Mp * Np * out_itemsize,
    )

    kernel = functools.partial(_linear_kernel, has_bias=has_bias, use_acc=use_acc)

    return pl.pallas_call(
        kernel,
        out_shape=jax.ShapeDtypeStruct((Mp, Np), out_dtype),
        grid_spec=pltpu.PrefetchScalarGridSpec(
            num_scalar_prefetch=0,
            grid=grid,
            in_specs=in_specs,
            out_specs=pl.BlockSpec((tm, tn), lambda i, j, k: (i, j)),
            scratch_shapes=scratch_shapes,
        ),
        compiler_params=pltpu.CompilerParams(
            dimension_semantics=("parallel", "parallel", "arbitrary"),
            vmem_limit_bytes=vmem_limit,
        ),
        cost_estimate=cost,
    )(*args)


@functools.partial(
    jax.jit, static_argnames=("has_bias", "tm", "tn", "tk", "out_features")
)
def _forward_jit(x, weight_full, bias, *, has_bias, tm, tn, tk, out_features):
    """Jitted end-to-end: pad + transpose + Pallas matmul + slice + reshape."""
    N, K = weight_full.shape
    leading = x.shape[:-1]
    x2d = x.reshape(-1, K)
    M = x2d.shape[0]

    Mp = _round_up(M, tm)
    Np = _round_up(N, tn)
    Kp = _round_up(K, tk)

    # Zero-pad to tile multiples: zeros along K contribute nothing to the
    # accumulation; padded M/N rows/cols are sliced off below.
    x_p = jnp.pad(x2d, ((0, Mp - M), (0, Kp - K))) if (Mp != M or Kp != K) else x2d

    # Pre-transpose the weight ONCE to (K, N): canonical (M,K)x(K,N) MXU
    # contraction with lane-dense weight/output tiles along N.
    w_t = weight_full.T
    w_p = jnp.pad(w_t, ((0, Kp - K), (0, Np - N))) if (Kp != K or Np != N) else w_t

    bias2d = None
    if has_bias:
        b = bias.reshape(1, N).astype(x2d.dtype)
        bias2d = jnp.pad(b, ((0, 0), (0, Np - N))) if Np != N else b

    out_p = _linear_pallas_padded(x_p, w_p, bias2d, tm=tm, tn=tn, tk=tk)
    out2d = out_p[:M, :N]
    return out2d.reshape(*leading, out_features)


def linear_zero3_forward(x, weight_shard, bias=None, world_size=1,
                         tm_max=256, tn_max=512, tk_max=512):
    """Forward pass of LinearZeRO3.

    x:            (..., input_features)
    weight_shard: (output_features // world_size, input_features)
    bias:         optional (output_features // world_size,)
    """
    # All-gather of the weight shard across the model-parallel group.
    # With world_size == 1 this is the identity; the shard IS the full weight.
    # TODO(synk): multi-device all-gather (make_async_remote_copy ring) not
    # implemented for this single-device synthetic setup.
    assert world_size == 1
    weight_full = weight_shard  # (N, K)

    N, K = weight_full.shape
    assert x.shape[-1] == K
    M = 1
    for d in x.shape[:-1]:
        M *= d

    # MXU-aligned tiles (multiples of 8 / 128 / 128) chosen to minimize
    # padding waste while staying under the per-dim tile caps.
    tm = _choose_tile(max(M, 1), tm_max, 8)
    tn = _choose_tile(N, tn_max, 128)
    tk = _choose_tile(K, tk_max, 128)

    return _forward_jit(
        x, weight_full, bias,
        has_bias=bias is not None, tm=tm, tn=tn, tk=tk, out_features=N,
    )


if __name__ == "__main__":
    # Shapes implied by the module: a linear layer over the last axis.
    batch, seq = 2, 8
    input_features, output_features = 32, 64
    world_size = 1  # synthetic single-device setting

    key = jax.random.PRNGKey(0)
    kx, kw, kb = jax.random.split(key, 3)
    x = jax.random.normal(kx, (batch, seq, input_features), dtype=jnp.float32)
    # Weight shard: (output_features // world_size, input_features).
    weight_shard = (
        jax.random.normal(
            kw, (output_features // world_size, input_features), dtype=jnp.float32
        )
        * 0.02
    )

    # --- module default: bias=False ---
    out = linear_zero3_forward(x, weight_shard, None, world_size=world_size)
    out = jax.block_until_ready(out)
    ref = jnp.einsum("bsk,nk->bsn", x, weight_shard)
    assert out.shape == (batch, seq, output_features)
    assert jnp.allclose(out, ref, atol=1e-5, rtol=1e-5)

    # --- bias=True path (exercises the fused epilogue) ---
    bias = jax.random.normal(kb, (output_features // world_size,), dtype=jnp.float32)
    out_b = linear_zero3_forward(x, weight_shard, bias, world_size=world_size)
    out_b = jax.block_until_ready(out_b)
    ref_b = ref + bias[None, None, :]
    assert jnp.allclose(out_b, ref_b, atol=1e-5, rtol=1e-5)

    print("KERNEL_OK")
</pallas_src>

<mosaic_0001>
module attributes {stable_mosaic.version = 11 : i64} {
  func.func @_linear_kernel(%arg0: i32, %arg1: i32, %arg2: i32, %arg3: memref<16x128xf32, #tpu.memory_space<vmem>>, %arg4: memref<128x128xf32, #tpu.memory_space<vmem>>, %arg5: memref<16x128xf32, #tpu.memory_space<vmem>>) attributes {dimension_semantics = [#tpu.dimension_semantics<parallel>, #tpu.dimension_semantics<parallel>, #tpu.dimension_semantics<arbitrary>], iteration_bounds = array<i64: 1, 1, 1>, scalar_prefetch = 0 : i64, scratch_operands = 0 : i64, tpu.core_type = #tpu.core_type<tc>, window_params = [{transform_indices = @transform_0, window_bounds = array<i64: 16, 128>}, {transform_indices = @transform_1, window_bounds = array<i64: 128, 128>}, {transform_indices = @transform_2, window_bounds = array<i64: 16, 128>}]} {
    %c0_i32 = arith.constant 0 : i32
    %0 = arith.cmpi eq, %arg2, %c0_i32 : i32
    %1 = arith.extui %0 : i1 to i32
    %c0_i32_0 = arith.constant 0 : i32
    %2 = arith.cmpi ne, %1, %c0_i32_0 : i32
    scf.if %2 {
      %cst_8 = arith.constant 0.000000e+00 : f32
      %9 = vector.broadcast %cst_8 : f32 to vector<16x128xf32>
      %c0_9 = arith.constant 0 : index
      %c0_10 = arith.constant 0 : index
      %10 = vector.load %arg5[%c0_9, %c0_10] : memref<16x128xf32, #tpu.memory_space<vmem>>, vector<16x128xf32>
      tpu.vector_store %arg5[%c0_9, %c0_10], %9 {strides = array<i32>} : memref<16x128xf32, #tpu.memory_space<vmem>>, vector<16x128xf32>,
    } else {
    }
    %c0 = arith.constant 0 : index
    %c0_1 = arith.constant 0 : index
    %3 = vector.load %arg5[%c0, %c0_1] : memref<16x128xf32, #tpu.memory_space<vmem>>, vector<16x128xf32>
    %c0_2 = arith.constant 0 : index
    %c0_3 = arith.constant 0 : index
    %4 = vector.load %arg3[%c0_2, %c0_3] : memref<16x128xf32, #tpu.memory_space<vmem>>, vector<16x128xf32>
    %c0_4 = arith.constant 0 : index
    %c0_5 = arith.constant 0 : index
    %5 = vector.load %arg4[%c0_4, %c0_5] : memref<128x128xf32, #tpu.memory_space<vmem>>, vector<128x128xf32>
    %cst = arith.constant dense<0.000000e+00> : vector<16x128xf32>
    %6 = tpu.matmul %4, %5, %cst {dimension_numbers = #tpu.dot_dimension_numbers<[1], [0], [0], [1], [0, 0, 1, 1], [], []>} : vector<16x128xf32>, vector<128x128xf32>, vector<16x128xf32> -> vector<16x128xf32>
    %7 = arith.addf %3, %6 : vector<16x128xf32>
    %c0_6 = arith.constant 0 : index
    %c0_7 = arith.constant 0 : index
    %8 = vector.load %arg5[%c0_6, %c0_7] : memref<16x128xf32, #tpu.memory_space<vmem>>, vector<16x128xf32>
    tpu.vector_store %arg5[%c0_6, %c0_7], %7 {strides = array<i32>} : memref<16x128xf32, #tpu.memory_space<vmem>>, vector<16x128xf32>,
    return
  }
  func.func @transform_0(%arg0: i32, %arg1: i32, %arg2: i32) -> (i32, i32) {
    %c0_i32 = arith.constant 0 : i32
    return %arg0, %arg2 : i32, i32
  }
  func.func @transform_1(%arg0: i32, %arg1: i32, %arg2: i32) -> (i32, i32) {
    %c0_i32 = arith.constant 0 : i32
    return %arg2, %arg1 : i32, i32
  }
  func.func @transform_2(%arg0: i32, %arg1: i32, %arg2: i32) -> (i32, i32) {
    %c0_i32 = arith.constant 0 : i32
    return %arg0, %arg1 : i32, i32
  }
}

</mosaic_0001>

<llo_original>
// kernel: _forward_jit.1
$region0: #{_forward_jit.1}
  #allocation0 [shape = 'u32[]', space=smem, size = 0x4, offset = 0x4, fixed_abs, tag = 'smem constant byte address 0x4 - core index']
  #allocation1 [shape = 'u32[72,128]{1,0:T(1,128)}', space=vmem, size = 0x9000, scoped, tag = 'internal scratch']
  %s0 = inlined_call_operand.vmem [shape: f32[16,128], index: 0, kind: input, shape index: {}]
  %s1 = inlined_call_operand.vmem [shape: f32[128,128], index: 1, kind: input, shape index: {}]
  %s2 = inlined_call_operand.vmem [shape: f32[16,128], index: 2, kind: output, shape index: {}]
  %s3 = sld [smem:[#allocation0]]
  $region22: #{_forward_jit.1} parent=0
    _
  %s5 = ssub.s32 1, %s3
  %s6 = scalar_select 0, %s5, %s3
  // Predicated region
  $region2: #{_forward_jit.1} parent=0 // pred_check
    _
  $region3: #{_forward_jit.1} parent=0 // pred_check_branch
    %8 = sbr.rel (0) target = $region5
  $region4: #{_forward_jit.1} parent=0 // pred_region
    _
  $region5: #{_forward_jit.1} parent=0 // pred_fallthru
    _
  // Predicated region
  $region6: #{_forward_jit.1} parent=0 // pred_check
    _
  $region7: #{_forward_jit.1} parent=0 // pred_check_branch
    %10 = sbr.rel (0) target = $region9
  $region8: #{_forward_jit.1} parent=0 // pred_region
    _
  $region9: #{_forward_jit.1} parent=0 // pred_fallthru
    _
  %p11 = scmp.eq.s32.totalorder 0, 0
  // Predicated region
  $region10: #{_forward_jit.1} parent=0 // pred_check
    %p12 = pneg %p11
  $region11: #{_forward_jit.1} parent=0 // pred_check_branch
    %14 = sbr.rel (%p12) target = $region13
  $region12: #{_forward_jit.1} parent=0 // pred_region
    %15 = vst [vmem:[%s2] sm:$0xff] 0.0
    %16 = vst [vmem:[%s2 + $0x8] sm:$0xff] 0.0
  $region13: #{_forward_jit.1} parent=0 // pred_fallthru
    _
  %v17 = vld [vmem:[%s2] sm:$0xff]
  %v18 = vld [vmem:[%s2 + $0x8] sm:$0xff]
  %v19 = vld [vmem:[%s0] sm:$0xff]
  %v20 = vld [vmem:[%s0 + $0x8] sm:$0xff]
  %v21 = vld [vmem:[%s1] sm:$0xff]
  %v22 = vld [vmem:[%s1 + $0x8] sm:$0xff]
  %v23 = vld [vmem:[%s1 + $0x10] sm:$0xff]
  %v24 = vld [vmem:[%s1 + $0x18] sm:$0xff]
  %v25 = vld [vmem:[%s1 + $0x20] sm:$0xff]
  %v26 = vld [vmem:[%s1 + $0x28] sm:$0xff]
  %v27 = vld [vmem:[%s1 + $0x30] sm:$0xff]
  %v28 = vld [vmem:[%s1 + $0x38] sm:$0xff]
  %v29 = vld [vmem:[%s1 + $0x40] sm:$0xff]
  %v30 = vld [vmem:[%s1 + $0x48] sm:$0xff]
  %v31 = vld [vmem:[%s1 + $0x50] sm:$0xff]
  %v32 = vld [vmem:[%s1 + $0x58] sm:$0xff]
  %v33 = vld [vmem:[%s1 + $0x60] sm:$0xff]
  %v34 = vld [vmem:[%s1 + $0x68] sm:$0xff]
  %v35 = vld [vmem:[%s1 + $0x70] sm:$0xff]
  %v36 = vld [vmem:[%s1 + $0x78] sm:$0xff]
  %37 = vmatpush.msra.mxu0 %v36
  %38 = vmatpush.msra.mxu0 %v35
  %39 = vmatpush.msra.mxu0 %v34
  %40 = vmatpush.msra.mxu0 %v33
  %41 = vmatpush.msra.mxu0 %v32
  %42 = vmatpush.msra.mxu0 %v31
  %43 = vmatpush.msra.mxu0 %v30
  %44 = vmatpush.msra.mxu0 %v29
  %45 = vmatpush.msra.mxu0 %v28
  %46 = vmatpush.msra.mxu0 %v27
  %47 = vmatpush.msra.mxu0 %v26
  %48 = vmatpush.msra.mxu0 %v25
  %49 = vmatpush.msra.mxu0 %v24
  %50 = vmatpush.msra.mxu0 %v23
  %51 = vmatpush.msra.mxu0 %v22
  %52 = vmatpush.msra.mxu0 %v21
  %53 = vmatmul.f32.gmra.mxu0 %v19
  %v54 = vpop.f32.mrf.mxu0
  %v55 = vadd.f32 0.0, %v54
  %56 = vmatmul.f32.gmra.mxu0 %v20
  %v57 = vpop.f32.mrf.mxu0
  %v58 = vadd.f32 0.0, %v57
  %59 = vdwg.mxu0
  %v60 = vadd.f32 %v17, %v55
  %v61 = vadd.f32 %v18, %v58
  %62 = vst [vmem:[%s2] sm:$0xff] %v60
  %63 = vst [vmem:[%s2 + $0x8] sm:$0xff] %v61
  // Predicated region
  $region14: #{_forward_jit.1} parent=0 // pred_check
    _
  $region15: #{_forward_jit.1} parent=0 // pred_check_branch
    %65 = sbr.rel (0) target = $region17
  $region16: #{_forward_jit.1} parent=0 // pred_region
    _
  $region17: #{_forward_jit.1} parent=0 // pred_fallthru
    _
  // Predicated region
  $region18: #{_forward_jit.1} parent=0 // pred_check
    _
  $region19: #{_forward_jit.1} parent=0 // pred_check_branch
    %67 = sbr.rel (0) target = $region21
  $region20: #{_forward_jit.1} parent=0 // pred_region
    _
  $region21: #{_forward_jit.1} parent=0 // pred_fallthru
    _

</llo_original>
